<compile_context>
chip_gen: v7x
topology: tpu7x:2x2x1
jax: 0.10.0
libtpu: 0.0.40
codegen_flags: <defaults>
</compile_context>

<pallas_src>
import functools

import jax
import jax.numpy as jnp
from jax import lax
from jax.experimental import pallas as pl
from jax.experimental.pallas import tpu as pltpu

_LANES = 128
_ROW_ALIGN = 32        # int8 vreg tile is (32, 128): keep rows/blocks 32-aligned
_STRIP_ROWS = 256      # in-kernel compute strip (bounds vreg pressure)
_MAX_BLOCK_ROWS = 8192 # 8192*128 int8 = 1 MiB per array per block (x2 dbl-buffered)


def _round_up(x: int, m: int) -> int:
    return ((x + m - 1) // m) * m


def _lookup_kernel(table_ref, tok_ref, out_ref, *, k: int, strip_rows: int):
    """out[r, l] = table[tok[r, l]]; ids outside [0, k) (incl. -1 pad) -> 0.

    table_ref : SMEM (k,) int32, scalar-prefetched.
    tok_ref / out_ref : VMEM (block_rows, 128) narrow-int tiles.
    """
    block_rows = out_ref.shape[0]
    n_full = block_rows // strip_rows
    rem = block_rows % strip_rows

    # Hoist the k scalar SMEM reads out of the strip loop.
    vals = [table_ref[j] for j in range(k)]

    def do_strip(r0, nrows):
        # Widen to int32 for the compare/select chain; pack back only at the
        # store.  Pure VPU compare+select, no one-hot, no XLU/MXU.
        tok = tok_ref[pl.ds(r0, nrows), :].astype(jnp.int32)
        acc = jnp.zeros(tok.shape, jnp.int32)
        # Statically unrolled chain; fine for small k (ANI dicts).  For
        # k ~ O(100) switch to a VMEM gather / bit-decomposed select tree.
        for j in range(k):
            acc = jnp.where(tok == j, vals[j], acc)
        out_ref[pl.ds(r0, nrows), :] = acc.astype(out_ref.dtype)

    if n_full > 0:
        def body(s, carry):
            do_strip(pl.multiple_of(s * strip_rows, strip_rows), strip_rows)
            return carry
        lax.fori_loop(0, n_full, body, 0, unroll=True)
    if rem > 0:
        do_strip(n_full * strip_rows, rem)


@functools.partial(jax.jit, static_argnames=("out_dtype",))
def _lookup_pallas(tokens, table, out_dtype):
    """tokens: (n,) int token ids; table: (k,) int32 values. Returns (n,) int32."""
    n = int(tokens.shape[0])
    k = int(table.shape[0])
    io_dtype = jnp.dtype(out_dtype)

    # Lane+sublane-dense layout: (rows, 128), rows padded only to the 32-row
    # tile granularity (not to a full block).
    rows = _round_up(max(1, -(-n // _LANES)), _ROW_ALIGN)
    if rows > _MAX_BLOCK_ROWS:
        block_rows = _MAX_BLOCK_ROWS
    elif rows >= 2 * _ROW_ALIGN:
        # At least 2 grid steps so v7x's two TensorCores split the row axis.
        block_rows = _round_up(-(-rows // 2), _ROW_ALIGN)
    else:
        block_rows = rows
    grid = pl.cdiv(rows, block_rows)  # ragged final block handled by Pallas
    n_pad = rows * _LANES
    strip_rows = min(_STRIP_ROWS, block_rows)

    # Pad with -1 sentinel (matches no valid token id -> lookup yields 0).
    tok_p = jnp.pad(tokens.astype(io_dtype), (0, n_pad - n), constant_values=-1)
    tok_p = tok_p.reshape(rows, _LANES)

    out = pl.pallas_call(
        functools.partial(_lookup_kernel, k=k, strip_rows=strip_rows),
        out_shape=jax.ShapeDtypeStruct((rows, _LANES), io_dtype),
        grid_spec=pltpu.PrefetchScalarGridSpec(
            num_scalar_prefetch=1,  # table -> SMEM before the grid runs
            grid=(grid,),
            in_specs=[pl.BlockSpec((block_rows, _LANES), lambda i, tbl: (i, 0))],
            out_specs=pl.BlockSpec((block_rows, _LANES), lambda i, tbl: (i, 0)),
        ),
        compiler_params=pltpu.CompilerParams(
            # Row blocks are independent -> megacore split on v7x.
            dimension_semantics=("parallel",),
        ),
    )(table, tok_p)

    # Slice off padding; present int32 to callers (torch.long equivalent).
    return out.reshape(n_pad)[:n].astype(jnp.int32)


class ChemicalSymbolsConvert:
    """JAX/Pallas equivalent of torchani._ChemicalSymbolsConvert."""

    def __init__(self, symbol_dict):
        self.symbol_dict = dict(symbol_dict)
        self._symbols = list(self.symbol_dict.keys())
        # String -> token id mapping must stay on the Python side (no Pallas
        # equivalent for string handling).
        self._sym_to_token = {s: i for i, s in enumerate(self._symbols)}
        values = [int(self.symbol_dict[s]) for s in self._symbols]
        self._table = jnp.array(values, dtype=jnp.int32)
        # Narrow kernel I/O to int8 (4x less HBM traffic) when both token ids
        # and mapped values fit (always true for atomic numbers).
        fits_i8 = len(values) <= 127 and all(-128 <= v <= 127 for v in values)
        self._io_dtype = jnp.int8 if fits_i8 else jnp.int32

    def __len__(self):
        return len(self.symbol_dict)

    def __call__(self, species):
        # Accept either a list of symbol strings (PyTorch-module semantics,
        # unknown symbols raise KeyError like the dict lookup) or an already
        # tokenized integer array (amortizes Python overhead).
        if isinstance(species, (list, tuple)):
            tokens = jnp.array(
                [self._sym_to_token[s] for s in species], dtype=jnp.int32
            )
        else:
            tokens = jnp.asarray(species, dtype=jnp.int32)
        if tokens.shape[0] == 0:
            return jnp.zeros((0,), dtype=jnp.int32)
        return _lookup_pallas(tokens, self._table, out_dtype=self._io_dtype)


if __name__ == "__main__":
    # Deterministic setup: a typical ANI symbol dict (symbol -> atomic number).
    symbol_dict = {"H": 1, "C": 6, "N": 7, "O": 8}
    convert = ChemicalSymbolsConvert(symbol_dict)

    symbols = list(symbol_dict.keys())
    key = jax.random.PRNGKey(0)
    k1, k2, k3 = jax.random.split(key, 3)

    # Case 1: small list of species strings (module's native interface).
    n_atoms = 8
    idx = jax.random.randint(k1, (n_atoms,), 0, len(symbol_dict))
    species = [symbols[int(i)] for i in idx]
    out = jax.block_until_ready(convert(species))
    expected = jnp.array([symbol_dict[s] for s in species], dtype=jnp.int32)
    assert out.shape == (n_atoms,), (out.shape, n_atoms)
    assert out.dtype == jnp.int32, out.dtype
    assert bool(jnp.all(out == expected)), (out, expected)

    # Case 2: pre-tokenized input exercising the padding path (single block).
    n_atoms2 = 300
    idx2 = jax.random.randint(k2, (n_atoms2,), 0, len(symbol_dict))
    out2 = jax.block_until_ready(convert(idx2))
    expected2 = convert._table[idx2]
    assert out2.shape == (n_atoms2,), (out2.shape, n_atoms2)
    assert bool(jnp.all(out2 == expected2)), "case-2 mismatch"

    # Case 3: path coverage for the multi-block grid, the in-kernel strip
    # loop and the remainder strip (rows=576 -> block_rows=288, strips 256+32).
    n_atoms3 = 70000
    idx3 = jax.random.randint(k3, (n_atoms3,), 0, len(symbol_dict))
    out3 = jax.block_until_ready(convert(idx3))
    expected3 = convert._table[idx3]
    assert out3.shape == (n_atoms3,), (out3.shape, n_atoms3)
    assert bool(jnp.all(out3 == expected3)), "case-3 mismatch"

    print("KERNEL_OK")
</pallas_src>

<mosaic_0001>
module attributes {stable_mosaic.version = 11 : i64} {
  func.func @_lookup_kernel(%arg0: i32, %arg1: memref<4xi32, #tpu.memory_space<smem>>, %arg2: memref<32x128xi8, #tpu.memory_space<vmem>>, %arg3: memref<32x128xi8, #tpu.memory_space<vmem>>) attributes {dimension_semantics = [#tpu.dimension_semantics<parallel>], iteration_bounds = array<i64: 1>, scalar_prefetch = 1 : i64, scratch_operands = 0 : i64, tpu.core_type = #tpu.core_type<tc>, window_params = [{transform_indices = @transform_0, window_bounds = array<i64: 32, 128>}, {transform_indices = @transform_1, window_bounds = array<i64: 32, 128>}]} {
    %c0 = arith.constant 0 : index
    %0 = memref.load %arg1[%c0] : memref<4xi32, #tpu.memory_space<smem>>
    %c1 = arith.constant 1 : index
    %1 = memref.load %arg1[%c1] : memref<4xi32, #tpu.memory_space<smem>>
    %c2 = arith.constant 2 : index
    %2 = memref.load %arg1[%c2] : memref<4xi32, #tpu.memory_space<smem>>
    %c3 = arith.constant 3 : index
    %3 = memref.load %arg1[%c3] : memref<4xi32, #tpu.memory_space<smem>>
    %c0_i32 = arith.constant 0 : i32
    %c32_i32 = arith.constant 32 : i32
    %4 = arith.muli %c0_i32, %c32_i32 : i32
    %5 = tpu.assume_multiple %4, 32 : i32
    %6 = arith.index_cast %5 : i32 to index
    %c0_0 = arith.constant 0 : index
    %7 = vector.load %arg2[%6, %c0_0] : memref<32x128xi8, #tpu.memory_space<vmem>>, vector<32x128xi8>
    %8 = arith.extsi %7 : vector<32x128xi8> to vector<32x128xi32>
    %c0_i32_1 = arith.constant 0 : i32
    %9 = vector.broadcast %c0_i32_1 : i32 to vector<32x128xi32>
    %c0_i32_2 = arith.constant 0 : i32
    %10 = vector.broadcast %c0_i32_2 : i32 to vector<32x128xi32>
    %11 = arith.cmpi eq, %8, %10 : vector<32x128xi32>
    %12 = vector.broadcast %0 : i32 to vector<32x128xi32>
    %13 = arith.select %11, %12, %9 : vector<32x128xi1>, vector<32x128xi32>
    %c1_i32 = arith.constant 1 : i32
    %14 = vector.broadcast %c1_i32 : i32 to vector<32x128xi32>
    %15 = arith.cmpi eq, %8, %14 : vector<32x128xi32>
    %16 = vector.broadcast %1 : i32 to vector<32x128xi32>
    %17 = arith.select %15, %16, %13 : vector<32x128xi1>, vector<32x128xi32>
    %c2_i32 = arith.constant 2 : i32
    %18 = vector.broadcast %c2_i32 : i32 to vector<32x128xi32>
    %19 = arith.cmpi eq, %8, %18 : vector<32x128xi32>
    %20 = vector.broadcast %2 : i32 to vector<32x128xi32>
    %21 = arith.select %19, %20, %17 : vector<32x128xi1>, vector<32x128xi32>
    %c3_i32 = arith.constant 3 : i32
    %22 = vector.broadcast %c3_i32 : i32 to vector<32x128xi32>
    %23 = arith.cmpi eq, %8, %22 : vector<32x128xi32>
    %24 = vector.broadcast %3 : i32 to vector<32x128xi32>
    %25 = arith.select %23, %24, %21 : vector<32x128xi1>, vector<32x128xi32>
    %26 = arith.trunci %25 : vector<32x128xi32> to vector<32x128xi8>
    %27 = arith.index_cast %5 : i32 to index
    %c0_3 = arith.constant 0 : index
    %28 = vector.load %arg3[%27, %c0_3] : memref<32x128xi8, #tpu.memory_space<vmem>>, vector<32x128xi8>
    tpu.vector_store %arg3[%27, %c0_3], %26 {strides = array<i32>} : memref<32x128xi8, #tpu.memory_space<vmem>>, vector<32x128xi8>,
    %c1_i32_4 = arith.constant 1 : i32
    return
  }
  func.func @transform_0(%arg0: i32, %arg1: memref<4xi32, #tpu.memory_space<smem>>) -> (i32, i32) {
    %c0_i32 = arith.constant 0 : i32
    %c0_i32_0 = arith.constant 0 : i32
    return %arg0, %c0_i32 : i32, i32
  }
  func.func @transform_1(%arg0: i32, %arg1: memref<4xi32, #tpu.memory_space<smem>>) -> (i32, i32) {
    %c0_i32 = arith.constant 0 : i32
    %c0_i32_0 = arith.constant 0 : i32
    return %arg0, %c0_i32 : i32, i32
  }
}

</mosaic_0001>

<llo_original>
// kernel: _lookup_pallas.1
$region0: #{_lookup_pallas.1}
  #allocation0 [shape = 'u32[]', space=smem, size = 0x4, offset = 0x4, fixed_abs, tag = 'smem constant byte address 0x4 - core index']
  #allocation1 [shape = 'u32[144,128]{1,0:T(1,128)}', space=vmem, size = 0x12000, scoped, tag = 'internal scratch']
  #allocation2 [shape = 's32[1]{0}', space=sflag, size = 0x4, scoped, tag = 'scoped memory for _lookup_pallas.1']
  #allocation3 [shape = 'u8[512]{0}', space=smem, size = 0x200, scoped, tag = 'prefetched SMEM operand 0']
  %s0 = inlined_call_operand.vmem [shape: s32[4], index: 0, kind: input, shape index: {}]
  %s1 = inlined_call_operand.vmem [shape: s8[32,128], index: 1, kind: input, shape index: {}]
  %s2 = inlined_call_operand.vmem [shape: s8[32,128], index: 2, kind: output, shape index: {}]
  %s3 = sld [smem:[#allocation0]]
  $region14: #{_lookup_pallas.1} parent=0
    _
  %s5 = ssub.s32 1, %s3
  %s6 = scalar_select 0, %s5, %s3
  %s7 = sshll.u32 %s0, 4
  %s8 = int_to_ptr.vmem [resolvable:$true] %s7
  %10 = dma.vmem_to_smem %s8, 16, [#allocation3], [#allocation2]
  %11 = dma.done [#allocation2], 16
  %12 = sfence
  // Predicated region
  $region2: #{_lookup_pallas.1} parent=0 // pred_check
    _
  $region3: #{_lookup_pallas.1} parent=0 // pred_check_branch
    %14 = sbr.rel (0) target = $region5
  $region4: #{_lookup_pallas.1} parent=0 // pred_region
    _
  $region5: #{_lookup_pallas.1} parent=0 // pred_fallthru
    _
  %s15 = sld [smem:[#allocation3]]
  %s16 = sld [smem:[#allocation3 + $0x1]]
  %s17 = sld [smem:[#allocation3 + $0x2]]
  %s18 = sld [smem:[#allocation3 + $0x3]]
  %v19 = vld [vmem:[%s1] sm:$0xff]
  %v20 = vunpack.c.0.s8 %v19
  %v21 = vunpack.c.1.s8 %v19
  %v22 = vunpack.c.2.s8 %v19
  %v23 = vunpack.c.3.s8 %v19
  %vm24 = vcmp.eq.s32.totalorder %v20, 0
  %vm25 = vcmp.eq.s32.totalorder %v21, 0
  %vm26 = vcmp.eq.s32.totalorder %v22, 0
  %vm27 = vcmp.eq.s32.totalorder %v23, 0
  %v28 = vstv %s15
  %v29 = vsel %vm24, %v28, 0
  %v30 = vsel %vm25, %v28, 0
  %v31 = vsel %vm26, %v28, 0
  %v32 = vsel %vm27, %v28, 0
  %vm33 = vcmp.eq.s32.totalorder %v20, 1
  %vm34 = vcmp.eq.s32.totalorder %v21, 1
  %vm35 = vcmp.eq.s32.totalorder %v22, 1
  %vm36 = vcmp.eq.s32.totalorder %v23, 1
  %v37 = vstv %s16
  %v38 = vsel %vm33, %v37, %v29
  %v39 = vsel %vm34, %v37, %v30
  %v40 = vsel %vm35, %v37, %v31
  %v41 = vsel %vm36, %v37, %v32
  %vm42 = vcmp.eq.s32.totalorder %v20, 2
  %vm43 = vcmp.eq.s32.totalorder %v21, 2
  %vm44 = vcmp.eq.s32.totalorder %v22, 2
  %vm45 = vcmp.eq.s32.totalorder %v23, 2
  %v46 = vstv %s17
  %v47 = vsel %vm42, %v46, %v38
  %v48 = vsel %vm43, %v46, %v39
  %v49 = vsel %vm44, %v46, %v40
  %v50 = vsel %vm45, %v46, %v41
  %vm51 = vcmp.eq.s32.totalorder %v20, 3
  %vm52 = vcmp.eq.s32.totalorder %v21, 3
  %vm53 = vcmp.eq.s32.totalorder %v22, 3
  %vm54 = vcmp.eq.s32.totalorder %v23, 3
  %v55 = vstv %s18
  %v56 = vsel %vm51, %v55, %v47
  %v57 = vsel %vm52, %v55, %v48
  %v58 = vsel %vm53, %v55, %v49
  %v59 = vsel %vm54, %v55, %v50
  %v60 = vpack.c.b16 %v56, %v56
  %v61 = vpack.c.b8 %v60, %v60
  %v62 = vpack.c.b16 %v57, %v57
  %v63 = vpack.c.b8 %v62, %v62
  %v64 = vpack.c.b16 %v58, %v58
  %v65 = vpack.c.b8 %v64, %v64
  %v66 = vpack.c.b16 %v59, %v59
  %v67 = vpack.c.b8 %v66, %v66
  %68 = vst [vmem:[%s2] sm:$0x3] %v61
  %69 = vst [vmem:[%s2 + $0x2] sm:$0x3] %v63
  %70 = vst [vmem:[%s2 + $0x4] sm:$0x3] %v65
  %71 = vst [vmem:[%s2 + $0x6] sm:$0x3] %v67
  // Predicated region
  $region6: #{_lookup_pallas.1} parent=0 // pred_check
    _
  $region7: #{_lookup_pallas.1} parent=0 // pred_check_branch
    %73 = sbr.rel (0) target = $region9
  $region8: #{_lookup_pallas.1} parent=0 // pred_region
    _
  $region9: #{_lookup_pallas.1} parent=0 // pred_fallthru
    _
  // Predicated region
  $region10: #{_lookup_pallas.1} parent=0 // pred_check
    _
  $region11: #{_lookup_pallas.1} parent=0 // pred_check_branch
    %75 = sbr.rel (0) target = $region13
  $region12: #{_lookup_pallas.1} parent=0 // pred_region
    _
  $region13: #{_lookup_pallas.1} parent=0 // pred_fallthru
    _

</llo_original>
